<compile_context>
chip_gen: v5e
topology: v5e:2x2
jax: 0.10.0
libtpu: 0.0.40
codegen_flags: <defaults>
</compile_context>

<pallas_src>
from math import pi

import jax
import jax.numpy as jnp
from jax.experimental import pallas as pl
from jax.experimental.pallas import tpu as pltpu


_LANE = 128                          # vreg lane width
_MAX_TILE_BYTES = 4 * 1024 * 1024    # ~4 MiB per block
_F32_MAX = 3.4028234663852886e38     # keeps +-inf out of the Newton step

# atan(z) ~= z * (1 + c1 z^2 + ... + c8 z^16) for |z| <= 1 (SLEEF atanf fit,
# ~3.5 ulp).  Coefficients pre-scaled by 2/pi so the kernel output needs no
# extra multiply, and the pi/2 of the |x|>1 branch becomes exactly 1.
_SLEEF = (
    -0.333331018686294555664062,
    0.199926957488059997558594,
    -0.142027363181114196777344,
    0.106347933411598205566406,
    -0.0748900920152664184570312,
    0.0425049886107444763183594,
    -0.0159569028764963150024414,
    0.00282363896258175373077393,
)
_COEFFS = tuple((2.0 / pi) * c for c in ((1.0,) + _SLEEF))   # a0..a8, a0 = 2/pi


def _atan_kernel(x_ref, o_ref):
    x = x_ref[...].astype(jnp.float32)
    ax = jnp.abs(x)
    big = ax > 1.0                              # |x| > 1: atan(x)=sgn*pi/2 - atan(1/x)

    axc = jnp.minimum(ax, _F32_MAX)             # clamp so inf stays well-defined
    r = pl.reciprocal(axc, approx=True)         # EUP reciprocal estimate
    r = r * (2.0 - axc * r)                     # one Newton step (VALU, cheap)

    z = jnp.where(big, r, ax)                   # z in [0, 1]
    s = z * z
    u = jnp.float32(_COEFFS[-1])
    for c in _COEFFS[-2::-1]:                   # Horner, unrolled at trace time
        u = u * s + jnp.float32(c)
    q = z * u                                   # (2/pi) * atan(z), z >= 0

    res = jnp.where(big, 1.0 - q, q)            # (pi/2) * (2/pi) == 1
    res = jnp.where(x < 0.0, -res, res)         # odd function
    o_ref[...] = res.astype(o_ref.dtype)


def _round_up(a: int, b: int) -> int:
    return (a + b - 1) // b * b


def _pick_width(main_n: int) -> int:
    for w in (1024, 512, 256, 128):
        if main_n % w == 0:
            return w
    return _LANE  # unreachable: main_n is a multiple of 128


def atan_pallas(x: jax.Array) -> jax.Array:
    """Equivalent of torch.atan(x) / (pi / 2), elementwise, float inputs."""
    orig_shape = x.shape
    dtype = x.dtype
    flat = x.reshape(-1)
    n = flat.shape[0]
    if n == 0:
        return x

    tail = n % _LANE
    main_n = n - tail

    out_main = None
    if main_n:
        w = _pick_width(main_n)
        rows = main_n // w
        slab = flat[:main_n].reshape(rows, w)     # free, contiguous view

        itemsize = jnp.dtype(dtype).itemsize
        sub = max(8, 32 // itemsize)              # sublane multiple per dtype packing

        if rows <= sub:
            block_rows = rows                     # one (possibly short) full block
        else:
            cap = max(sub, (_MAX_TILE_BYTES // (w * itemsize)) // sub * sub)
            half = _round_up(pl.cdiv(rows, 2), sub)   # >=2 blocks -> both v7x TCs
            block_rows = max(sub, min(cap, half))

        grid = (pl.cdiv(rows, block_rows),)       # ragged last block is masked

        out = pl.pallas_call(
            _atan_kernel,
            out_shape=jax.ShapeDtypeStruct((rows, w), dtype),
            grid_spec=pltpu.PrefetchScalarGridSpec(
                num_scalar_prefetch=0,
                grid=grid,
                in_specs=[pl.BlockSpec((block_rows, w), lambda i: (i, 0))],
                out_specs=pl.BlockSpec((block_rows, w), lambda i: (i, 0)),
            ),
            compiler_params=pltpu.CompilerParams(
                dimension_semantics=("parallel",),
                vmem_limit_bytes=32 * 1024 * 1024,
            ),
        )(slab)
        out_main = out.reshape(-1)

    if tail:
        tail_x = flat[main_n:]
        out_tail = (jnp.arctan(tail_x.astype(jnp.float32)) * (2.0 / pi)).astype(dtype)
        out_flat = out_tail if out_main is None else jnp.concatenate(
            [out_main, out_tail])
    else:
        out_flat = out_main

    return out_flat.reshape(orig_shape)


if __name__ == "__main__":
    key = jax.random.PRNGKey(0)
    x = jax.random.normal(key, (2, 4, 16, 16), dtype=jnp.float32) * 3.0

    y = atan_pallas(x)
    jax.block_until_ready(y)

    y_ref = jnp.arctan(x) / (pi / 2)
    assert y.shape == x.shape and y.dtype == x.dtype
    # typical observed error ~5e-7 (poly ~3.5 ulp + refined reciprocal);
    # 1e-5 absolute on a (-1, 1)-ranged output leaves safe headroom.
    assert float(jnp.max(jnp.abs(y - y_ref))) < 1e-5

    # non-multiple-of-128 size: exercises ragged row block + plain-JAX tail
    x2 = jax.random.normal(jax.random.PRNGKey(1), (5, 7, 11),
                           dtype=jnp.float32) * 10.0
    y2 = atan_pallas(x2)
    jax.block_until_ready(y2)
    assert float(jnp.max(jnp.abs(y2 - jnp.arctan(x2) / (pi / 2)))) < 1e-5

    print("KERNEL_OK")
</pallas_src>

<mosaic_0001>
module attributes {stable_mosaic.version = 11 : i64} {
  func.func @_atan_kernel(%arg0: i32, %arg1: memref<2x1024xf32, #tpu.memory_space<vmem>>, %arg2: memref<2x1024xf32, #tpu.memory_space<vmem>>) attributes {dimension_semantics = [#tpu.dimension_semantics<parallel>], iteration_bounds = array<i64: 1>, scalar_prefetch = 0 : i64, scratch_operands = 0 : i64, tpu.core_type = #tpu.core_type<tc>, window_params = [{transform_indices = @transform_0, window_bounds = array<i64: 2, 1024>}, {transform_indices = @transform_1, window_bounds = array<i64: 2, 1024>}]} {
    %c0 = arith.constant 0 : index
    %c0_0 = arith.constant 0 : index
    %0 = vector.load %arg1[%c0, %c0_0] : memref<2x1024xf32, #tpu.memory_space<vmem>>, vector<2x1024xf32>
    %1 = math.absf %0 : vector<2x1024xf32>
    %cst = arith.constant 1.000000e+00 : f32
    %2 = vector.broadcast %cst : f32 to vector<2x1024xf32>
    %3 = arith.cmpf ogt, %1, %2 : vector<2x1024xf32>
    %cst_1 = arith.constant 3.40282347E+38 : f32
    %4 = vector.broadcast %cst_1 : f32 to vector<2x1024xf32>
    %5 = arith.minimumf %1, %4 : vector<2x1024xf32>
    %6 = tpu.reciprocal %5 {approx = true} : vector<2x1024xf32> -> vector<2x1024xf32>
    %7 = arith.mulf %5, %6 : vector<2x1024xf32>
    %cst_2 = arith.constant 2.000000e+00 : f32
    %8 = vector.broadcast %cst_2 : f32 to vector<2x1024xf32>
    %9 = arith.subf %8, %7 : vector<2x1024xf32>
    %10 = arith.mulf %6, %9 : vector<2x1024xf32>
    %11 = arith.select %3, %10, %1 : vector<2x1024xi1>, vector<2x1024xf32>
    %12 = arith.mulf %11, %11 : vector<2x1024xf32>
    %cst_3 = arith.constant 0.00179758435 : f32
    %13 = vector.broadcast %cst_3 : f32 to vector<2x1024xf32>
    %14 = arith.mulf %13, %12 : vector<2x1024xf32>
    %cst_4 = arith.constant -0.0101584801 : f32
    %15 = vector.broadcast %cst_4 : f32 to vector<2x1024xf32>
    %16 = arith.addf %14, %15 : vector<2x1024xf32>
    %17 = arith.mulf %16, %12 : vector<2x1024xf32>
    %cst_5 = arith.constant 0.0270595159 : f32
    %18 = vector.broadcast %cst_5 : f32 to vector<2x1024xf32>
    %19 = arith.addf %17, %18 : vector<2x1024xf32>
    %20 = arith.mulf %19, %12 : vector<2x1024xf32>
    %cst_6 = arith.constant -0.0476765148 : f32
    %21 = vector.broadcast %cst_6 : f32 to vector<2x1024xf32>
    %22 = arith.addf %20, %21 : vector<2x1024xf32>
    %23 = arith.mulf %22, %12 : vector<2x1024xf32>
    %cst_7 = arith.constant 0.0677031949 : f32
    %24 = vector.broadcast %cst_7 : f32 to vector<2x1024xf32>
    %25 = arith.addf %23, %24 : vector<2x1024xf32>
    %26 = arith.mulf %25, %12 : vector<2x1024xf32>
    %cst_8 = arith.constant -0.0904174298 : f32
    %27 = vector.broadcast %cst_8 : f32 to vector<2x1024xf32>
    %28 = arith.addf %26, %27 : vector<2x1024xf32>
    %29 = arith.mulf %28, %12 : vector<2x1024xf32>
    %cst_9 = arith.constant 0.127277449 : f32
    %30 = vector.broadcast %cst_9 : f32 to vector<2x1024xf32>
    %31 = arith.addf %29, %30 : vector<2x1024xf32>
    %32 = arith.mulf %31, %12 : vector<2x1024xf32>
    %cst_10 = arith.constant -0.212205112 : f32
    %33 = vector.broadcast %cst_10 : f32 to vector<2x1024xf32>
    %34 = arith.addf %32, %33 : vector<2x1024xf32>
    %35 = arith.mulf %34, %12 : vector<2x1024xf32>
    %cst_11 = arith.constant 0.636619746 : f32
    %36 = vector.broadcast %cst_11 : f32 to vector<2x1024xf32>
    %37 = arith.addf %35, %36 : vector<2x1024xf32>
    %38 = arith.mulf %11, %37 : vector<2x1024xf32>
    %cst_12 = arith.constant 1.000000e+00 : f32
    %39 = vector.broadcast %cst_12 : f32 to vector<2x1024xf32>
    %40 = arith.subf %39, %38 : vector<2x1024xf32>
    %41 = arith.select %3, %40, %38 : vector<2x1024xi1>, vector<2x1024xf32>
    %cst_13 = arith.constant 0.000000e+00 : f32
    %42 = vector.broadcast %cst_13 : f32 to vector<2x1024xf32>
    %43 = arith.cmpf olt, %0, %42 : vector<2x1024xf32>
    %cst_14 = arith.constant 0.000000e+00 : f32
    %44 = vector.broadcast %cst_14 : f32 to vector<2x1024xf32>
    %45 = arith.subf %44, %41 : vector<2x1024xf32>
    %46 = arith.select %43, %45, %41 : vector<2x1024xi1>, vector<2x1024xf32>
    %c0_15 = arith.constant 0 : index
    %c0_16 = arith.constant 0 : index
    %47 = vector.load %arg2[%c0_15, %c0_16] : memref<2x1024xf32, #tpu.memory_space<vmem>>, vector<2x1024xf32>
    tpu.vector_store %arg2[%c0_15, %c0_16], %46 {strides = array<i32>} : memref<2x1024xf32, #tpu.memory_space<vmem>>, vector<2x1024xf32>,
    return
  }
  func.func @transform_0(%arg0: i32) -> (i32, i32) {
    %c0_i32 = arith.constant 0 : i32
    %c0_i32_0 = arith.constant 0 : i32
    return %arg0, %c0_i32 : i32, i32
  }
  func.func @transform_1(%arg0: i32) -> (i32, i32) {
    %c0_i32 = arith.constant 0 : i32
    %c0_i32_0 = arith.constant 0 : i32
    return %arg0, %c0_i32 : i32, i32
  }
}

</mosaic_0001>

<llo_original>
// kernel: tpu_custom_call.1
$region0: #{tpu_custom_call.1}
  #allocation0 [shape = 'u32[]', space=smem, size = 0x4, offset = 0x4, fixed_abs, tag = 'smem constant byte address 0x4 - core index']
  #allocation1 [shape = 'u32[72,128]{1,0:T(1,128)}', space=vmem, size = 0x9000, scoped, tag = 'internal scratch']
  %s0 = inlined_call_operand.hbm [shape: f32[2,1024], index: 0, kind: input, shape index: {}]
  %s1 = inlined_call_operand.hbm [shape: f32[2,1024], index: 1, kind: output, shape index: {}]
  %s2 = sld [smem:[#allocation0]]
  $region18: #{tpu_custom_call.1} parent=0
    _
  %s4 = ssub.s32 1, %s2
  %s5 = scalar_select 0, %s4, %s2
  $region1: #{tpu_custom_call.1} parent=0
    #allocation2 [shape = 'u8[8192]{0}', space=vmem, size = 0x2000, scoped, tag = 'input window, operand 0, single buffered']
    #allocation3 [shape = 's32[1]{0}', space=sflag, size = 0x4, scoped, tag = 'scoped memory for tpu_custom_call.1']
    #allocation4 [shape = 's32[1]{0}', space=sflag, size = 0x4, scoped, tag = 'scoped memory for tpu_custom_call.1']
    #allocation5 [shape = 'u8[8192]{0}', space=vmem, size = 0x2000, scoped, tag = 'output window, operand 0, single buffered']
    %6 = vsyncpa [#allocation3], 0
    %7 = vsyncpa [#allocation4], 0
    // Predicated region
    $region2: #{tpu_custom_call.1} parent=1 // pred_check
      _
    $region3: #{tpu_custom_call.1} parent=1 // pred_check_branch
      %9 = sbr.rel (0) target = $region5
    $region4: #{tpu_custom_call.1} parent=1 // pred_region
      %11 = vsyncadd [#allocation3], 0
      %s13 = sshll.u32 %s0, 4
      %s14 = int_to_ptr.hbm [resolvable:$true] %s13
      %s15 = sshll.u32 [#allocation2], 4
      %s16 = int_to_ptr.vmem [resolvable:$true] %s15
      %18 = dma.hbm_to_vmem [thread:$0]  %s14, 256, %s16, [#allocation3]
    $region5: #{tpu_custom_call.1} parent=1 // pred_fallthru
      _
    // Predicated region
    $region6: #{tpu_custom_call.1} parent=1 // pred_check
      _
    $region7: #{tpu_custom_call.1} parent=1 // pred_check_branch
      %20 = sbr.rel (0) target = $region9
    $region8: #{tpu_custom_call.1} parent=1 // pred_region
      %22 = dma.done [#allocation3], 256
    $region9: #{tpu_custom_call.1} parent=1 // pred_fallthru
      _
    %v23 = vld [vmem:[#allocation2] sm:$0xff]
    %v24 = vld [vmem:[#allocation2 + $0x8] sm:$0xff]
    %v25 = vand.u32 2147483647, %v23
    %v26 = vand.u32 2147483647, %v24
    %vm27 = vcmp.gt.f32.partialorder %v25, 1.0
    %vm28 = vcmp.gt.f32.partialorder %v26, 1.0
    %v29 = vmin.f32 %v25, 3.4028235e+38
    %v30 = vmin.f32 %v26, 3.4028235e+38
    %v31 = vrcp.pop %v29
    %v32 = vrcp.pop %v30
    %v33 = vmul.f32 %v29, %v31
    %v34 = vmul.f32 %v30, %v32
    %v35 = vsub.f32 2.0, %v33
    %v36 = vsub.f32 2.0, %v34
    %v37 = vmul.f32 %v31, %v35
    %v38 = vmul.f32 %v32, %v36
    %v39 = vsel %vm27, %v37, %v25
    %v40 = vsel %vm28, %v38, %v26
    %v41 = vmul.f32 %v39, %v39
    %v42 = vmul.f32 %v40, %v40
    %v43 = vmul.f32 %v41, 0.0017975844
    %v44 = vmul.f32 %v42, 0.0017975844
    %v45 = vadd.f32 %v43, -0.01015848
    %v46 = vadd.f32 %v44, -0.01015848
    %v47 = vmul.f32 %v45, %v41
    %v48 = vmul.f32 %v46, %v42
    %v49 = vadd.f32 %v47, 0.027059516
    %v50 = vadd.f32 %v48, 0.027059516
    %v51 = vmul.f32 %v49, %v41
    %v52 = vmul.f32 %v50, %v42
    %v53 = vadd.f32 %v51, -0.047676515
    %v54 = vadd.f32 %v52, -0.047676515
    %v55 = vmul.f32 %v53, %v41
    %v56 = vmul.f32 %v54, %v42
    %v57 = vadd.f32 %v55, 0.067703195
    %v58 = vadd.f32 %v56, 0.067703195
    %v59 = vmul.f32 %v57, %v41
    %v60 = vmul.f32 %v58, %v42
    %v61 = vadd.f32 %v59, -0.09041743
    %v62 = vadd.f32 %v60, -0.09041743
    %v63 = vmul.f32 %v61, %v41
    %v64 = vmul.f32 %v62, %v42
    %v65 = vadd.f32 %v63, 0.12727745
    %v66 = vadd.f32 %v64, 0.12727745
    %v67 = vmul.f32 %v65, %v41
    %v68 = vmul.f32 %v66, %v42
    %v69 = vadd.f32 %v67, -0.21220511
    %v70 = vadd.f32 %v68, -0.21220511
    %v71 = vmul.f32 %v69, %v41
    %v72 = vmul.f32 %v70, %v42
    %v73 = vadd.f32 %v71, 0.63661975
    %v74 = vadd.f32 %v72, 0.63661975
    %v75 = vmul.f32 %v39, %v73
    %v76 = vmul.f32 %v40, %v74
    %v77 = vsub.f32 1.0, %v75
    %v78 = vsub.f32 1.0, %v76
    %v79 = vsel %vm27, %v77, %v75
    %v80 = vsel %vm28, %v78, %v76
    %vm81 = vcmp.lt.f32.partialorder %v23, 0.0
    %vm82 = vcmp.lt.f32.partialorder %v24, 0.0
    %v83 = vsub.f32 0.0, %v79
    %v84 = vsub.f32 0.0, %v80
    %v85 = vsel %vm81, %v83, %v79
    %v86 = vsel %vm82, %v84, %v80
    %87 = vst [vmem:[#allocation5] sm:$0xff] %v85
    %88 = vst [vmem:[#allocation5 + $0x8] sm:$0xff] %v86
    // Predicated region
    $region10: #{tpu_custom_call.1} parent=1 // pred_check
      _
    $region11: #{tpu_custom_call.1} parent=1 // pred_check_branch
      %90 = sbr.rel (0) target = $region13
    $region12: #{tpu_custom_call.1} parent=1 // pred_region
      %92 = vsyncadd [#allocation4], 0
      %s94 = sshll.u32 [#allocation5], 4
      %s95 = int_to_ptr.vmem [resolvable:$true] %s94
      %s96 = sshll.u32 %s1, 4
      %s97 = int_to_ptr.hbm [resolvable:$true] %s96
      %99 = dma.vmem_to_hbm [thread:$0]  %s95, 256, %s97, [#allocation4]
    $region13: #{tpu_custom_call.1} parent=1 // pred_fallthru
      _
    // Predicated region
    $region14: #{tpu_custom_call.1} parent=1 // pred_check
      _
    $region15: #{tpu_custom_call.1} parent=1 // pred_check_branch
      %101 = sbr.rel (0) target = $region17
    $region16: #{tpu_custom_call.1} parent=1 // pred_region
      %103 = dma.done [#allocation4], 256
    $region17: #{tpu_custom_call.1} parent=1 // pred_fallthru
      _
    %104 = vsyncpa [#allocation3], 1
    %105 = vsyncpa [#allocation4], 1

</llo_original>
